<compile_context>
chip_gen: v5e
topology: v5e:2x2
jax: 0.10.0
libtpu: 0.0.40
codegen_flags: <defaults>
</compile_context>

<pallas_src>
import jax
import jax.numpy as jnp
from jax.experimental import pallas as pl
from jax.experimental.pallas import tpu as pltpu

_EPS = 1e-5  # nn.BatchNorm1d default eps


# ----------------------------------------------------------------------------
# Kernels
# ----------------------------------------------------------------------------
def _make_fast_kernel(*, has_copy, n_rows, count):
    """Single-step kernel: everything VMEM-resident, no scratch, no grid."""
    inv_count = 1.0 / float(count)

    def kernel(*refs):
        if has_copy:
            x_ref, res_ref, w1_ref, w2_ref, bn_ref, o_ref = refs
        else:
            x_ref, w1_ref, w2_ref, bn_ref, o_ref = refs
            res_ref = x_ref  # residual = x (requires C_in == C_out)

        cout = o_ref.shape[1]
        w1 = w1_ref[...]
        w2 = w2_ref[...]
        bn = bn_ref[...]
        g1, be1, g2, be2 = bn[:, 0:1], bn[:, 1:2], bn[:, 2:3], bn[:, 3:4]

        def h1_of(n):
            # conv1 (k=1) == pointwise matmul; bias absorbed by training-mode BN1.
            return jnp.dot(w1, x_ref[n], preferred_element_type=jnp.float32)

        # ---- pass 1: BN1 statistics ----
        s1 = jnp.zeros((cout, 1), jnp.float32)
        q1 = jnp.zeros((cout, 1), jnp.float32)
        for n in range(n_rows):
            h1 = h1_of(n)
            s1 = s1 + jnp.sum(h1, axis=1, keepdims=True)
            q1 = q1 + jnp.sum(h1 * h1, axis=1, keepdims=True)
        mu1 = s1 * inv_count
        var1 = jnp.maximum(q1 * inv_count - mu1 * mu1, 0.0)
        scale1 = g1 * jax.lax.rsqrt(var1 + _EPS)
        shift1 = be1 - mu1 * scale1

        def h2_of(n):
            a1 = jnp.maximum(h1_of(n) * scale1 + shift1, 0.0)
            return jnp.dot(w2, a1.astype(w2.dtype),
                           preferred_element_type=jnp.float32)

        # ---- pass 2: BN2 statistics ----
        s2 = jnp.zeros((cout, 1), jnp.float32)
        q2 = jnp.zeros((cout, 1), jnp.float32)
        for n in range(n_rows):
            h2 = h2_of(n)
            s2 = s2 + jnp.sum(h2, axis=1, keepdims=True)
            q2 = q2 + jnp.sum(h2 * h2, axis=1, keepdims=True)
        mu2 = s2 * inv_count
        var2 = jnp.maximum(q2 * inv_count - mu2 * mu2, 0.0)
        scale2 = g2 * jax.lax.rsqrt(var2 + _EPS)
        shift2 = be2 - mu2 * scale2

        # ---- pass 3: output ----
        for n in range(n_rows):
            h2 = h2_of(n)
            res = res_ref[n].astype(jnp.float32)
            o_ref[n] = jnp.maximum(h2 * scale2 + shift2 + res,
                                   0.0).astype(o_ref.dtype)

    return kernel


def _make_tiled_kernel(*, has_copy, nb_rows, count, l_valid, tile_l, need_mask):
    """3-phase streaming kernel, blocks of (nb_rows, C, tile_l)."""
    inv_count = 1.0 / float(count)

    def kernel(*refs):
        if has_copy:
            (x_ref, res_ref, w1_ref, w2_ref, bn_ref, o_ref,
             s1_ref, q1_ref, s2_ref, q2_ref) = refs
        else:
            (x_ref, w1_ref, w2_ref, bn_ref, o_ref,
             s1_ref, q1_ref, s2_ref, q2_ref) = refs
            res_ref = x_ref  # residual = x (requires C_in == C_out)

        p = pl.program_id(0)   # phase
        b = pl.program_id(1)   # batch block
        t = pl.program_id(2)   # L tile

        @pl.when((p == 0) & (b == 0) & (t == 0))
        def _init():
            s1_ref[...] = jnp.zeros_like(s1_ref)
            q1_ref[...] = jnp.zeros_like(q1_ref)
            s2_ref[...] = jnp.zeros_like(s2_ref)
            q2_ref[...] = jnp.zeros_like(q2_ref)

        w1 = w1_ref[...]
        w2 = w2_ref[...]
        bn = bn_ref[...]
        g1, be1, g2, be2 = bn[:, 0:1], bn[:, 1:2], bn[:, 2:3], bn[:, 3:4]

        def h1_of(n):
            return jnp.dot(w1, x_ref[n], preferred_element_type=jnp.float32)

        def bn1_scale_shift():
            mu1 = s1_ref[...] * inv_count
            var1 = jnp.maximum(q1_ref[...] * inv_count - mu1 * mu1, 0.0)
            sc = g1 * jax.lax.rsqrt(var1 + _EPS)
            return sc, be1 - mu1 * sc

        def h2_of(n, scale1, shift1):
            a1 = jnp.maximum(h1_of(n) * scale1 + shift1, 0.0)
            return jnp.dot(w2, a1.astype(w2.dtype),
                           preferred_element_type=jnp.float32)

        @pl.when(p == 0)
        def _bn1_stats():
            s1 = jnp.zeros(s1_ref.shape, jnp.float32)
            q1 = jnp.zeros(q1_ref.shape, jnp.float32)
            for n in range(nb_rows):
                h1 = h1_of(n)
                s1 = s1 + jnp.sum(h1, axis=1, keepdims=True)
                q1 = q1 + jnp.sum(h1 * h1, axis=1, keepdims=True)
            s1_ref[...] += s1
            q1_ref[...] += q1

        @pl.when(p == 1)
        def _bn2_stats():
            scale1, shift1 = bn1_scale_shift()
            if need_mask:
                col = t * tile_l + jax.lax.broadcasted_iota(
                    jnp.int32, (1, tile_l), 1)
                valid = col < l_valid
            s2 = jnp.zeros(s2_ref.shape, jnp.float32)
            q2 = jnp.zeros(q2_ref.shape, jnp.float32)
            for n in range(nb_rows):
                h2 = h2_of(n, scale1, shift1)
                if need_mask:
                    h2 = jnp.where(valid, h2, 0.0)
                s2 = s2 + jnp.sum(h2, axis=1, keepdims=True)
                q2 = q2 + jnp.sum(h2 * h2, axis=1, keepdims=True)
            s2_ref[...] += s2
            q2_ref[...] += q2

        @pl.when(p == 2)
        def _write():
            scale1, shift1 = bn1_scale_shift()
            mu2 = s2_ref[...] * inv_count
            var2 = jnp.maximum(q2_ref[...] * inv_count - mu2 * mu2, 0.0)
            scale2 = g2 * jax.lax.rsqrt(var2 + _EPS)
            shift2 = be2 - mu2 * scale2
            for n in range(nb_rows):
                h2 = h2_of(n, scale1, shift1)
                res = res_ref[n].astype(jnp.float32)
                o_ref[n] = jnp.maximum(h2 * scale2 + shift2 + res,
                                       0.0).astype(o_ref.dtype)

    return kernel


# ----------------------------------------------------------------------------
# Tiling / dispatch
# ----------------------------------------------------------------------------
def _round_up(a, b):
    return (a + b - 1) // b * b


_BLOCK_BUDGET_ELEMS = (2 * 1024 * 1024) // 4   # ~2 MiB f32 per data block
_VMEM_LIMIT_BYTES = 32 * 1024 * 1024           # safe on v5e/v6e/v7x


def _choose_tiling(N, cmax, L, tile_l=None):
    lpad128 = _round_up(L, 128)
    if tile_l is None:
        cap = max(128, (_BLOCK_BUDGET_ELEMS // cmax) // 128 * 128)
        tile_l = min(lpad128, cap)
    assert tile_l % 128 == 0
    l_pad = _round_up(L, tile_l)
    # batch-row blocking: largest divisor of N (<=16) that keeps block <= budget
    nb = 1
    for d in range(1, min(N, 16) + 1):
        if N % d == 0 and d * cmax * tile_l <= _BLOCK_BUDGET_ELEMS:
            nb = d
    return nb, tile_l, l_pad


def resnet_block_1d(x, params, copy=None, *, force_tiled=False, tile_l=None):
    """x: (N, C_in, L) -> (N, C_out, L), training-mode BatchNorm."""
    w1, b1, g1, be1, w2, b2, g2, be2 = params
    del b1, b2  # algebraically cancelled by training-mode BatchNorm
    N, Cin, L = x.shape
    Cout = w1.shape[0]
    has_copy = copy is not None
    if has_copy:
        assert copy.shape == (N, Cout, L), "copy must be (N, C_out, L)"
    else:
        assert Cin == Cout, "residual path without `copy` requires C_in == C_out"

    # Keep bf16 operands on the MXU; otherwise compute in f32.
    mxu_dtype = jnp.bfloat16 if x.dtype == jnp.bfloat16 else jnp.float32
    w1_2d = w1.reshape(Cout, Cin).astype(mxu_dtype)
    w2_2d = w2.reshape(Cout, Cout).astype(mxu_dtype)
    bn_pack = jnp.stack([g1, be1, g2, be2], axis=1).astype(jnp.float32)  # (Cout,4)

    # ---- small-input fast path: single step, whole problem VMEM-resident ----
    itemsize = jnp.dtype(x.dtype).itemsize
    act_bytes = N * L * itemsize * (Cin + Cout + (Cout if has_copy else 0))
    if (not force_tiled) and N <= 16 and act_bytes <= 6 * 1024 * 1024:
        kernel = _make_fast_kernel(has_copy=has_copy, n_rows=N, count=N * L)
        args = (x, copy, w1_2d, w2_2d, bn_pack) if has_copy else \
               (x, w1_2d, w2_2d, bn_pack)
        return pl.pallas_call(
            kernel,
            out_shape=jax.ShapeDtypeStruct((N, Cout, L), x.dtype),
            compiler_params=pltpu.CompilerParams(
                vmem_limit_bytes=_VMEM_LIMIT_BYTES),
        )(*args)

    # ---- tiled streaming path ----
    nb, tile_l, l_pad = _choose_tiling(N, max(Cin, Cout), L, tile_l)
    if l_pad != L:
        pad = ((0, 0), (0, 0), (0, l_pad - L))
        x = jnp.pad(x, pad)
        if has_copy:
            copy = jnp.pad(copy, pad)
    num_lt = l_pad // tile_l
    n_blk = N // nb

    data_map = lambda p, b, t: (b, 0, t)
    # Output / copy blocks only advance during phase 2; frozen at (0,0,0) in the
    # statistics phases so no extra HBM traffic (no re-fetch / garbage writeback).
    p2_map = lambda p, b, t: (jnp.where(p == 2, b, 0), 0,
                              jnp.where(p == 2, t, 0))
    const2 = lambda p, b, t: (0, 0)

    args = [x]
    in_specs = [pl.BlockSpec((nb, Cin, tile_l), data_map)]
    if has_copy:
        args.append(copy)
        in_specs.append(pl.BlockSpec((nb, Cout, tile_l), p2_map))
    args += [w1_2d, w2_2d, bn_pack]
    in_specs += [
        pl.BlockSpec((Cout, Cin), const2),    # W1 (VMEM-resident)
        pl.BlockSpec((Cout, Cout), const2),   # W2 (VMEM-resident)
        pl.BlockSpec((Cout, 4), const2),      # packed [g1, be1, g2, be2]
    ]

    kernel = _make_tiled_kernel(has_copy=has_copy, nb_rows=nb, count=N * L,
                                l_valid=L, tile_l=tile_l,
                                need_mask=(l_pad != L))

    out = pl.pallas_call(
        kernel,
        out_shape=jax.ShapeDtypeStruct((N, Cout, l_pad), x.dtype),
        grid=(3, n_blk, num_lt),
        in_specs=in_specs,
        out_specs=pl.BlockSpec((nb, Cout, tile_l), p2_map),
        scratch_shapes=[pltpu.VMEM((Cout, 1), jnp.float32) for _ in range(4)],
        compiler_params=pltpu.CompilerParams(
            # Shared stat accumulators force sequential phases -> all arbitrary.
            dimension_semantics=("arbitrary", "arbitrary", "arbitrary"),
            vmem_limit_bytes=_VMEM_LIMIT_BYTES,
        ),
    )(*args)

    return out[:, :, :L] if l_pad != L else out


# ----------------------------------------------------------------------------
# Pure-JAX reference (mirrors the PyTorch forward, training-mode BN)
# ----------------------------------------------------------------------------
def _reference(x, params, copy=None):
    w1, b1, g1, be1, w2, b2, g2, be2 = params

    def conv1x1(a, w, b):
        return jnp.einsum("ncl,oc->nol", a, w[:, :, 0]) + b[None, :, None]

    def bn(a, g, be):
        mu = jnp.mean(a, axis=(0, 2), keepdims=True)
        var = jnp.mean((a - mu) ** 2, axis=(0, 2), keepdims=True)
        return (a - mu) * jax.lax.rsqrt(var + _EPS) * g[None, :, None] \
            + be[None, :, None]

    out = jax.nn.relu(bn(conv1x1(x, w1, b1), g1, be1))
    out = bn(conv1x1(out, w2, b2), g2, be2)
    out = out + (copy if copy is not None else x)
    return jax.nn.relu(out)


if __name__ == "__main__":
    key = jax.random.PRNGKey(0)
    ks = jax.random.split(key, 12)

    N, C, L = 2, 8, 256            # kernel_size=1; C_in == C_out for residual
    bound = 1.0 / (C ** 0.5)

    x = jax.random.normal(ks[0], (N, C, L), jnp.float32)
    w1 = jax.random.uniform(ks[1], (C, C, 1), jnp.float32, -bound, bound)
    b1 = jax.random.uniform(ks[2], (C,), jnp.float32, -bound, bound)
    w2 = jax.random.uniform(ks[3], (C, C, 1), jnp.float32, -bound, bound)
    b2 = jax.random.uniform(ks[4], (C,), jnp.float32, -bound, bound)
    g1 = 1.0 + 0.1 * jax.random.normal(ks[5], (C,), jnp.float32)
    be1 = 0.1 * jax.random.normal(ks[6], (C,), jnp.float32)
    g2 = 1.0 + 0.1 * jax.random.normal(ks[7], (C,), jnp.float32)
    be2 = 0.1 * jax.random.normal(ks[8], (C,), jnp.float32)
    params = (w1, b1, g1, be1, w2, b2, g2, be2)

    # 1) fast path: residual = x, aligned L
    out1 = jax.block_until_ready(resnet_block_1d(x, params))
    ref1 = _reference(x, params)
    assert out1.shape == (N, C, L)
    assert bool(jnp.allclose(out1, ref1, atol=1e-4, rtol=1e-4)), \
        "mismatch (fast path, copy=None)"

    # 2) fast path: explicit copy, unaligned L (no padding copies needed)
    L2 = 200
    x2 = jax.random.normal(ks[9], (N, C, L2), jnp.float32)
    cp2 = jax.random.normal(ks[10], (N, C, L2), jnp.float32)
    out2 = jax.block_until_ready(resnet_block_1d(x2, params, copy=cp2))
    ref2 = _reference(x2, params, copy=cp2)
    assert out2.shape == (N, C, L2)
    assert bool(jnp.allclose(out2, ref2, atol=1e-4, rtol=1e-4)), \
        "mismatch (fast path, copy)"

    # 3) tiled path forced: multiple L tiles + batch blocking, streaming stats
    out3 = jax.block_until_ready(
        resnet_block_1d(x, params, force_tiled=True, tile_l=128))
    assert bool(jnp.allclose(out3, ref1, atol=1e-4, rtol=1e-4)), \
        "mismatch (tiled path, copy=None)"

    # 4) tiled path forced: unaligned L (padding + masked stats) + copy
    out4 = jax.block_until_ready(
        resnet_block_1d(x2, params, copy=cp2, force_tiled=True, tile_l=128))
    assert out4.shape == (N, C, L2)
    assert bool(jnp.allclose(out4, ref2, atol=1e-4, rtol=1e-4)), \
        "mismatch (tiled path, copy)"

    print("KERNEL_OK")
</pallas_src>

<mosaic_0001>
module attributes {stable_mosaic.version = 11 : i64} {
  func.func @kernel(%arg0: memref<2x8x256xf32, #tpu.memory_space<vmem>>, %arg1: memref<8x8xf32, #tpu.memory_space<vmem>>, %arg2: memref<8x8xf32, #tpu.memory_space<vmem>>, %arg3: memref<8x4xf32, #tpu.memory_space<vmem>>, %arg4: memref<2x8x256xf32, #tpu.memory_space<vmem>>) attributes {dimension_semantics = [], scalar_prefetch = 0 : i64, scratch_operands = 0 : i64, tpu.core_type = #tpu.core_type<tc>} {
    %c0 = arith.constant 0 : index
    %c0_0 = arith.constant 0 : index
    %0 = vector.load %arg1[%c0, %c0_0] : memref<8x8xf32, #tpu.memory_space<vmem>>, vector<8x8xf32>
    %c0_1 = arith.constant 0 : index
    %c0_2 = arith.constant 0 : index
    %1 = vector.load %arg2[%c0_1, %c0_2] : memref<8x8xf32, #tpu.memory_space<vmem>>, vector<8x8xf32>
    %c0_3 = arith.constant 0 : index
    %c0_4 = arith.constant 0 : index
    %2 = vector.load %arg3[%c0_3, %c0_4] : memref<8x4xf32, #tpu.memory_space<vmem>>, vector<8x4xf32>
    %3 = vector.extract_strided_slice %2 {offsets = [0, 0], sizes = [8, 1], strides = [1, 1]} : vector<8x4xf32> to vector<8x1xf32>
    %4 = vector.extract_strided_slice %2 {offsets = [0, 1], sizes = [8, 1], strides = [1, 1]} : vector<8x4xf32> to vector<8x1xf32>
    %5 = vector.extract_strided_slice %2 {offsets = [0, 2], sizes = [8, 1], strides = [1, 1]} : vector<8x4xf32> to vector<8x1xf32>
    %6 = vector.extract_strided_slice %2 {offsets = [0, 3], sizes = [8, 1], strides = [1, 1]} : vector<8x4xf32> to vector<8x1xf32>
    %cst = arith.constant 0.000000e+00 : f32
    %7 = vector.broadcast %cst : f32 to vector<8x1xf32>
    %cst_5 = arith.constant 0.000000e+00 : f32
    %8 = vector.broadcast %cst_5 : f32 to vector<8x1xf32>
    %c0_6 = arith.constant 0 : index
    %c0_7 = arith.constant 0 : index
    %c0_8 = arith.constant 0 : index
    %9 = vector.load %arg0[%c0_6, %c0_7, %c0_8] : memref<2x8x256xf32, #tpu.memory_space<vmem>>, vector<1x8x256xf32>
    %10 = vector.shape_cast %9 : vector<1x8x256xf32> to vector<8x256xf32>
    %cst_9 = arith.constant dense<0.000000e+00> : vector<8x256xf32>
    %11 = tpu.matmul %0, %10, %cst_9 {dimension_numbers = #tpu.dot_dimension_numbers<[1], [0], [0], [1], [0, 0, 1, 1], [], []>} : vector<8x8xf32>, vector<8x256xf32>, vector<8x256xf32> -> vector<8x256xf32>
    %cst_10 = arith.constant dense<0.000000e+00> : vector<8xf32>
    %12 = vector.multi_reduction <add>, %11, %cst_10 [1] : vector<8x256xf32> to vector<8xf32>
    %13 = vector.shape_cast %12 : vector<8xf32> to vector<8x1xf32>
    %14 = arith.addf %7, %13 : vector<8x1xf32>
    %15 = arith.mulf %11, %11 : vector<8x256xf32>
    %cst_11 = arith.constant dense<0.000000e+00> : vector<8xf32>
    %16 = vector.multi_reduction <add>, %15, %cst_11 [1] : vector<8x256xf32> to vector<8xf32>
    %17 = vector.shape_cast %16 : vector<8xf32> to vector<8x1xf32>
    %18 = arith.addf %8, %17 : vector<8x1xf32>
    %c1 = arith.constant 1 : index
    %c0_12 = arith.constant 0 : index
    %c0_13 = arith.constant 0 : index
    %19 = vector.load %arg0[%c1, %c0_12, %c0_13] : memref<2x8x256xf32, #tpu.memory_space<vmem>>, vector<1x8x256xf32>
    %20 = vector.shape_cast %19 : vector<1x8x256xf32> to vector<8x256xf32>
    %cst_14 = arith.constant dense<0.000000e+00> : vector<8x256xf32>
    %21 = tpu.matmul %0, %20, %cst_14 {dimension_numbers = #tpu.dot_dimension_numbers<[1], [0], [0], [1], [0, 0, 1, 1], [], []>} : vector<8x8xf32>, vector<8x256xf32>, vector<8x256xf32> -> vector<8x256xf32>
    %cst_15 = arith.constant dense<0.000000e+00> : vector<8xf32>
    %22 = vector.multi_reduction <add>, %21, %cst_15 [1] : vector<8x256xf32> to vector<8xf32>
    %23 = vector.shape_cast %22 : vector<8xf32> to vector<8x1xf32>
    %24 = arith.addf %14, %23 : vector<8x1xf32>
    %25 = arith.mulf %21, %21 : vector<8x256xf32>
    %cst_16 = arith.constant dense<0.000000e+00> : vector<8xf32>
    %26 = vector.multi_reduction <add>, %25, %cst_16 [1] : vector<8x256xf32> to vector<8xf32>
    %27 = vector.shape_cast %26 : vector<8xf32> to vector<8x1xf32>
    %28 = arith.addf %18, %27 : vector<8x1xf32>
    %cst_17 = arith.constant 0.001953125 : f32
    %29 = vector.broadcast %cst_17 : f32 to vector<8x1xf32>
    %30 = arith.mulf %24, %29 : vector<8x1xf32>
    %cst_18 = arith.constant 0.001953125 : f32
    %31 = vector.broadcast %cst_18 : f32 to vector<8x1xf32>
    %32 = arith.mulf %28, %31 : vector<8x1xf32>
    %33 = arith.mulf %30, %30 : vector<8x1xf32>
    %34 = arith.subf %32, %33 : vector<8x1xf32>
    %cst_19 = arith.constant 0.000000e+00 : f32
    %35 = vector.broadcast %cst_19 : f32 to vector<8x1xf32>
    %36 = arith.maximumf %34, %35 : vector<8x1xf32>
    %cst_20 = arith.constant 9.99999974E-6 : f32
    %37 = vector.broadcast %cst_20 : f32 to vector<8x1xf32>
    %38 = arith.addf %36, %37 : vector<8x1xf32>
    %39 = math.rsqrt %38 : vector<8x1xf32>
    %40 = arith.mulf %3, %39 : vector<8x1xf32>
    %41 = arith.mulf %30, %40 : vector<8x1xf32>
    %42 = arith.subf %4, %41 : vector<8x1xf32>
    %cst_21 = arith.constant 0.000000e+00 : f32
    %43 = vector.broadcast %cst_21 : f32 to vector<8x1xf32>
    %cst_22 = arith.constant 0.000000e+00 : f32
    %44 = vector.broadcast %cst_22 : f32 to vector<8x1xf32>
    %c0_23 = arith.constant 0 : index
    %c0_24 = arith.constant 0 : index
    %c0_25 = arith.constant 0 : index
    %45 = vector.load %arg0[%c0_23, %c0_24, %c0_25] : memref<2x8x256xf32, #tpu.memory_space<vmem>>, vector<1x8x256xf32>
    %46 = vector.shape_cast %45 : vector<1x8x256xf32> to vector<8x256xf32>
    %cst_26 = arith.constant dense<0.000000e+00> : vector<8x256xf32>
    %47 = tpu.matmul %0, %46, %cst_26 {dimension_numbers = #tpu.dot_dimension_numbers<[1], [0], [0], [1], [0, 0, 1, 1], [], []>} : vector<8x8xf32>, vector<8x256xf32>, vector<8x256xf32> -> vector<8x256xf32>
    %48 = vector.broadcast %40 : vector<8x1xf32> to vector<8x256xf32>
    %49 = arith.mulf %47, %48 : vector<8x256xf32>
    %50 = vector.broadcast %42 : vector<8x1xf32> to vector<8x256xf32>
    %51 = arith.addf %49, %50 : vector<8x256xf32>
    %cst_27 = arith.constant 0.000000e+00 : f32
    %52 = vector.broadcast %cst_27 : f32 to vector<8x256xf32>
    %53 = arith.maximumf %51, %52 : vector<8x256xf32>
    %cst_28 = arith.constant dense<0.000000e+00> : vector<8x256xf32>
    %54 = tpu.matmul %1, %53, %cst_28 {dimension_numbers = #tpu.dot_dimension_numbers<[1], [0], [0], [1], [0, 0, 1, 1], [], []>} : vector<8x8xf32>, vector<8x256xf32>, vector<8x256xf32> -> vector<8x256xf32>
    %cst_29 = arith.constant dense<0.000000e+00> : vector<8xf32>
    %55 = vector.multi_reduction <add>, %54, %cst_29 [1] : vector<8x256xf32> to vector<8xf32>
    %56 = vector.shape_cast %55 : vector<8xf32> to vector<8x1xf32>
    %57 = arith.addf %43, %56 : vector<8x1xf32>
    %58 = arith.mulf %54, %54 : vector<8x256xf32>
    %cst_30 = arith.constant dense<0.000000e+00> : vector<8xf32>
    %59 = vector.multi_reduction <add>, %58, %cst_30 [1] : vector<8x256xf32> to vector<8xf32>
    %60 = vector.shape_cast %59 : vector<8xf32> to vector<8x1xf32>
    %61 = arith.addf %44, %60 : vector<8x1xf32>
    %c1_31 = arith.constant 1 : index
    %c0_32 = arith.constant 0 : index
    %c0_33 = arith.constant 0 : index
    %62 = vector.load %arg0[%c1_31, %c0_32, %c0_33] : memref<2x8x256xf32, #tpu.memory_space<vmem>>, vector<1x8x256xf32>
    %63 = vector.shape_cast %62 : vector<1x8x256xf32> to vector<8x256xf32>
    %cst_34 = arith.constant dense<0.000000e+00> : vector<8x256xf32>
    %64 = tpu.matmul %0, %63, %cst_34 {dimension_numbers = #tpu.dot_dimension_numbers<[1], [0], [0], [1], [0, 0, 1, 1], [], []>} : vector<8x8xf32>, vector<8x256xf32>, vector<8x256xf32> -> vector<8x256xf32>
    %65 = vector.broadcast %40 : vector<8x1xf32> to vector<8x256xf32>
    %66 = arith.mulf %64, %65 : vector<8x256xf32>
    %67 = vector.broadcast %42 : vector<8x1xf32> to vector<8x256xf32>
    %68 = arith.addf %66, %67 : vector<8x256xf32>
    %cst_35 = arith.constant 0.000000e+00 : f32
    %69 = vector.broadcast %cst_35 : f32 to vector<8x256xf32>
    %70 = arith.maximumf %68, %69 : vector<8x256xf32>
    %cst_36 = arith.constant dense<0.000000e+00> : vector<8x256xf32>
    %71 = tpu.matmul %1, %70, %cst_36 {dimension_numbers = #tpu.dot_dimension_numbers<[1], [0], [0], [1], [0, 0, 1, 1], [], []>} : vector<8x8xf32>, vector<8x256xf32>, vector<8x256xf32> -> vector<8x256xf32>
    %cst_37 = arith.constant dense<0.000000e+00> : vector<8xf32>
    %72 = vector.multi_reduction <add>, %71, %cst_37 [1] : vector<8x256xf32> to vector<8xf32>
    %73 = vector.shape_cast %72 : vector<8xf32> to vector<8x1xf32>
    %74 = arith.addf %57, %73 : vector<8x1xf32>
    %75 = arith.mulf %71, %71 : vector<8x256xf32>
    %cst_38 = arith.constant dense<0.000000e+00> : vector<8xf32>
    %76 = vector.multi_reduction <add>, %75, %cst_38 [1] : vector<8x256xf32> to vector<8xf32>
    %77 = vector.shape_cast %76 : vector<8xf32> to vector<8x1xf32>
    %78 = arith.addf %61, %77 : vector<8x1xf32>
    %cst_39 = arith.constant 0.001953125 : f32
    %79 = vector.broadcast %cst_39 : f32 to vector<8x1xf32>
    %80 = arith.mulf %74, %79 : vector<8x1xf32>
    %cst_40 = arith.constant 0.001953125 : f32
    %81 = vector.broadcast %cst_40 : f32 to vector<8x1xf32>
    %82 = arith.mulf %78, %81 : vector<8x1xf32>
    %83 = arith.mulf %80, %80 : vector<8x1xf32>
    %84 = arith.subf %82, %83 : vector<8x1xf32>
    %cst_41 = arith.constant 0.000000e+00 : f32
    %85 = vector.broadcast %cst_41 : f32 to vector<8x1xf32>
    %86 = arith.maximumf %84, %85 : vector<8x1xf32>
    %cst_42 = arith.constant 9.99999974E-6 : f32
    %87 = vector.broadcast %cst_42 : f32 to vector<8x1xf32>
    %88 = arith.addf %86, %87 : vector<8x1xf32>
    %89 = math.rsqrt %88 : vector<8x1xf32>
    %90 = arith.mulf %5, %89 : vector<8x1xf32>
    %91 = arith.mulf %80, %90 : vector<8x1xf32>
    %92 = arith.subf %6, %91 : vector<8x1xf32>
    %c0_43 = arith.constant 0 : index
    %c0_44 = arith.constant 0 : index
    %c0_45 = arith.constant 0 : index
    %93 = vector.load %arg0[%c0_43, %c0_44, %c0_45] : memref<2x8x256xf32, #tpu.memory_space<vmem>>, vector<1x8x256xf32>
    %94 = vector.shape_cast %93 : vector<1x8x256xf32> to vector<8x256xf32>
    %cst_46 = arith.constant dense<0.000000e+00> : vector<8x256xf32>
    %95 = tpu.matmul %0, %94, %cst_46 {dimension_numbers = #tpu.dot_dimension_numbers<[1], [0], [0], [1], [0, 0, 1, 1], [], []>} : vector<8x8xf32>, vector<8x256xf32>, vector<8x256xf32> -> vector<8x256xf32>
    %96 = vector.broadcast %40 : vector<8x1xf32> to vector<8x256xf32>
    %97 = arith.mulf %95, %96 : vector<8x256xf32>
    %98 = vector.broadcast %42 : vector<8x1xf32> to vector<8x256xf32>
    %99 = arith.addf %97, %98 : vector<8x256xf32>
    %cst_47 = arith.constant 0.000000e+00 : f32
    %100 = vector.broadcast %cst_47 : f32 to vector<8x256xf32>
    %101 = arith.maximumf %99, %100 : vector<8x256xf32>
    %cst_48 = arith.constant dense<0.000000e+00> : vector<8x256xf32>
    %102 = tpu.matmul %1, %101, %cst_48 {dimension_numbers = #tpu.dot_dimension_numbers<[1], [0], [0], [1], [0, 0, 1, 1], [], []>} : vector<8x8xf32>, vector<8x256xf32>, vector<8x256xf32> -> vector<8x256xf32>
    %c0_49 = arith.constant 0 : index
    %c0_50 = arith.constant 0 : index
    %c0_51 = arith.constant 0 : index
    %103 = vector.load %arg0[%c0_49, %c0_50, %c0_51] : memref<2x8x256xf32, #tpu.memory_space<vmem>>, vector<1x8x256xf32>
    %104 = vector.shape_cast %103 : vector<1x8x256xf32> to vector<8x256xf32>
    %105 = vector.broadcast %90 : vector<8x1xf32> to vector<8x256xf32>
    %106 = arith.mulf %102, %105 : vector<8x256xf32>
    %107 = vector.broadcast %92 : vector<8x1xf32> to vector<8x256xf32>
    %108 = arith.addf %106, %107 : vector<8x256xf32>
    %109 = arith.addf %108, %104 : vector<8x256xf32>
    %cst_52 = arith.constant 0.000000e+00 : f32
    %110 = vector.broadcast %cst_52 : f32 to vector<8x256xf32>
    %111 = arith.maximumf %109, %110 : vector<8x256xf32>
    %c0_53 = arith.constant 0 : index
    %c0_54 = arith.constant 0 : index
    %c0_55 = arith.constant 0 : index
    %112 = vector.load %arg4[%c0_53, %c0_54, %c0_55] : memref<2x8x256xf32, #tpu.memory_space<vmem>>, vector<1x8x256xf32>
    %113 = vector.shape_cast %112 : vector<1x8x256xf32> to vector<8x256xf32>
    %114 = vector.shape_cast %111 : vector<8x256xf32> to vector<1x8x256xf32>
    tpu.vector_store %arg4[%c0_53, %c0_54, %c0_55], %114 {strides = array<i32>} : memref<2x8x256xf32, #tpu.memory_space<vmem>>, vector<1x8x256xf32>,
    %c1_56 = arith.constant 1 : index
    %c0_57 = arith.constant 0 : index
    %c0_58 = arith.constant 0 : index
    %115 = vector.load %arg0[%c1_56, %c0_57, %c0_58] : memref<2x8x256xf32, #tpu.memory_space<vmem>>, vector<1x8x256xf32>
    %116 = vector.shape_cast %115 : vector<1x8x256xf32> to vector<8x256xf32>
    %cst_59 = arith.constant dense<0.000000e+00> : vector<8x256xf32>
    %117 = tpu.matmul %0, %116, %cst_59 {dimension_numbers = #tpu.dot_dimension_numbers<[1], [0], [0], [1], [0, 0, 1, 1], [], []>} : vector<8x8xf32>, vector<8x256xf32>, vector<8x256xf32> -> vector<8x256xf32>
    %118 = vector.broadcast %40 : vector<8x1xf32> to vector<8x256xf32>
    %119 = arith.mulf %117, %118 : vector<8x256xf32>
    %120 = vector.broadcast %42 : vector<8x1xf32> to vector<8x256xf32>
    %121 = arith.addf %119, %120 : vector<8x256xf32>
    %cst_60 = arith.constant 0.000000e+00 : f32
    %122 = vector.broadcast %cst_60 : f32 to vector<8x256xf32>
    %123 = arith.maximumf %121, %122 : vector<8x256xf32>
    %cst_61 = arith.constant dense<0.000000e+00> : vector<8x256xf32>
    %124 = tpu.matmul %1, %123, %cst_61 {dimension_numbers = #tpu.dot_dimension_numbers<[1], [0], [0], [1], [0, 0, 1, 1], [], []>} : vector<8x8xf32>, vector<8x256xf32>, vector<8x256xf32> -> vector<8x256xf32>
    %c1_62 = arith.constant 1 : index
    %c0_63 = arith.constant 0 : index
    %c0_64 = arith.constant 0 : index
    %125 = vector.load %arg0[%c1_62, %c0_63, %c0_64] : memref<2x8x256xf32, #tpu.memory_space<vmem>>, vector<1x8x256xf32>
    %126 = vector.shape_cast %125 : vector<1x8x256xf32> to vector<8x256xf32>
    %127 = vector.broadcast %90 : vector<8x1xf32> to vector<8x256xf32>
    %128 = arith.mulf %124, %127 : vector<8x256xf32>
    %129 = vector.broadcast %92 : vector<8x1xf32> to vector<8x256xf32>
    %130 = arith.addf %128, %129 : vector<8x256xf32>
    %131 = arith.addf %130, %126 : vector<8x256xf32>
    %cst_65 = arith.constant 0.000000e+00 : f32
    %132 = vector.broadcast %cst_65 : f32 to vector<8x256xf32>
    %133 = arith.maximumf %131, %132 : vector<8x256xf32>
    %c1_66 = arith.constant 1 : index
    %c0_67 = arith.constant 0 : index
    %c0_68 = arith.constant 0 : index
    %134 = vector.load %arg4[%c1_66, %c0_67, %c0_68] : memref<2x8x256xf32, #tpu.memory_space<vmem>>, vector<1x8x256xf32>
    %135 = vector.shape_cast %134 : vector<1x8x256xf32> to vector<8x256xf32>
    %136 = vector.shape_cast %133 : vector<8x256xf32> to vector<1x8x256xf32>
    tpu.vector_store %arg4[%c1_66, %c0_67, %c0_68], %136 {strides = array<i32>} : memref<2x8x256xf32, #tpu.memory_space<vmem>>, vector<1x8x256xf32>,
    return
  }
}

</mosaic_0001>

<llo_original>
// kernel: tpu_custom_call.1
$region0: #{tpu_custom_call.1}
  #allocation0 [shape = 'u32[]', space=smem, size = 0x4, offset = 0x4, fixed_abs, tag = 'smem constant byte address 0x4 - core index']
  #allocation1 [shape = 'u32[72,128]{1,0:T(1,128)}', space=vmem, size = 0x9000, scoped, tag = 'internal scratch']
  %s0 = inlined_call_operand.hbm [shape: f32[2,8,256], index: 0, kind: input, shape index: {}]
  %s1 = inlined_call_operand.vmem [shape: f32[8,8], index: 1, kind: input, shape index: {}]
  %s2 = inlined_call_operand.hbm [shape: f32[8,8], index: 2, kind: input, shape index: {}]
  %s3 = inlined_call_operand.vmem [shape: f32[8,4], index: 3, kind: input, shape index: {}]
  %s4 = inlined_call_operand.hbm [shape: f32[2,8,256], index: 4, kind: output, shape index: {}]
  %s5 = sld [smem:[#allocation0]]
  $region34: #{tpu_custom_call.1} parent=0
    _
  %s7 = ssub.s32 1, %s5
  %s8 = scalar_select 0, %s7, %s5
  $region1: #{tpu_custom_call.1} parent=0
    #allocation2 [shape = 'u8[16384]{0}', space=vmem, size = 0x4000, scoped, tag = 'input window, operand 0, single buffered']
    #allocation3 [shape = 's32[1]{0}', space=sflag, size = 0x4, scoped, tag = 'scoped memory for tpu_custom_call.1']
    #allocation4 [shape = 's32[1]{0}', space=sflag, size = 0x4, scoped, tag = 'scoped memory for tpu_custom_call.1']
    #allocation5 [shape = 'u8[4096]{0}', space=vmem, size = 0x1000, scoped, tag = 'input window, operand 2, single buffered']
    #allocation6 [shape = 's32[1]{0}', space=sflag, size = 0x4, scoped, tag = 'scoped memory for tpu_custom_call.1']
    #allocation7 [shape = 'u8[16384]{0}', space=vmem, size = 0x4000, scoped, tag = 'output window, operand 0, single buffered']
    %9 = vsyncpa [#allocation3], 0
    %10 = vsyncpa [#allocation6], 0
    %11 = vsyncpa [#allocation4], 0
    // Predicated region
    $region2: #{tpu_custom_call.1} parent=1 // pred_check
      _
    $region3: #{tpu_custom_call.1} parent=1 // pred_check_branch
      %13 = sbr.rel (0) target = $region5
    $region4: #{tpu_custom_call.1} parent=1 // pred_region
      %15 = vsyncadd [#allocation3], 0
      %s16 = sshll.u32 %s0, 4
      %s17 = int_to_ptr.hbm [resolvable:$true] %s16
      %s18 = sshll.u32 [#allocation2], 4
      %s19 = int_to_ptr.vmem [resolvable:$true] %s18
      %24 = dma.hbm_to_vmem [thread:$0]  %s17, 512, %s19, [#allocation3], 256, 256, 16
    $region5: #{tpu_custom_call.1} parent=1 // pred_fallthru
      _
    // Predicated region
    $region6: #{tpu_custom_call.1} parent=1 // pred_check
      _
    $region7: #{tpu_custom_call.1} parent=1 // pred_check_branch
      %26 = sbr.rel (0) target = $region9
    $region8: #{tpu_custom_call.1} parent=1 // pred_region
      _
    $region9: #{tpu_custom_call.1} parent=1 // pred_fallthru
      _
    // Predicated region
    $region10: #{tpu_custom_call.1} parent=1 // pred_check
      _
    $region11: #{tpu_custom_call.1} parent=1 // pred_check_branch
      %28 = sbr.rel (0) target = $region13
    $region12: #{tpu_custom_call.1} parent=1 // pred_region
      %30 = vsyncadd [#allocation6], 0
      %s32 = sshll.u32 %s2, 4
      %s33 = int_to_ptr.hbm [resolvable:$true] %s32
      %s34 = sshll.u32 [#allocation5], 4
      %s35 = int_to_ptr.vmem [resolvable:$true] %s34
      %37 = dma.hbm_to_vmem [thread:$0]  %s33, 128, %s35, [#allocation6]
    $region13: #{tpu_custom_call.1} parent=1 // pred_fallthru
      _
    // Predicated region
    $region14: #{tpu_custom_call.1} parent=1 // pred_check
      _
    $region15: #{tpu_custom_call.1} parent=1 // pred_check_branch
      %39 = sbr.rel (0) target = $region17
    $region16: #{tpu_custom_call.1} parent=1 // pred_region
      _
    $region17: #{tpu_custom_call.1} parent=1 // pred_fallthru
      _
    // Predicated region
    $region18: #{tpu_custom_call.1} parent=1 // pred_check
      _
    $region19: #{tpu_custom_call.1} parent=1 // pred_check_branch
      %41 = sbr.rel (0) target = $region21
    $region20: #{tpu_custom_call.1} parent=1 // pred_region
      %43 = dma.done [#allocation3], 512
    $region21: #{tpu_custom_call.1} parent=1 // pred_fallthru
      _
    // Predicated region
    $region22: #{tpu_custom_call.1} parent=1 // pred_check
      _
    $region23: #{tpu_custom_call.1} parent=1 // pred_check_branch
      %45 = sbr.rel (0) target = $region25
    $region24: #{tpu_custom_call.1} parent=1 // pred_region
      %47 = dma.done [#allocation6], 128
    $region25: #{tpu_custom_call.1} parent=1 // pred_fallthru
      _
    %v48 = vld [vmem:[%s1] sm:$0xff]
    %v49 = vld [vmem:[#allocation5] sm:$0xff]
    %v50 = vld [vmem:[%s3] sm:$0xff]
    %v51 = vld [vmem:[#allocation2] sm:$0xff]
    %v52 = vld [vmem:[#allocation2 + $0x8] sm:$0xff]
    %vm53 = vcmask 64512
    %v55 = vsel %vm53, %v48, 0
    %57 = vmatpush.msra.mxu0 0.0
    %58 = vmatpush.msra.mxu0 0.0
    %59 = vmatpush.msra.mxu0 0.0
    %60 = vmatpush.msra.mxu0 0.0
    %61 = vmatpush.msra.mxu0 0.0
    %62 = vmatpush.msra.mxu0 0.0
    %63 = vmatpush.msra.mxu0 0.0
    %64 = vmatpush.msra.mxu0 0.0
    %65 = vmatpush.msra.mxu0 0.0
    %66 = vmatpush.msra.mxu0 0.0
    %67 = vmatpush.msra.mxu0 0.0
    %68 = vmatpush.msra.mxu0 0.0
    %69 = vmatpush.msra.mxu0 0.0
    %70 = vmatpush.msra.mxu0 0.0
    %71 = vmatpush.msra.mxu0 0.0
    %72 = vmatpush.msra.mxu0 %v51
    %73 = vmatmul.f32.gmra.mxu0 %v55
    %v74 = vpop.f32.mrf.mxu0
    %v75 = vadd.f32 0.0, %v74
    %76 = vdwg.mxu0
    %77 = vmatpush.msra.mxu0 0.0
    %78 = vmatpush.msra.mxu0 0.0
    %79 = vmatpush.msra.mxu0 0.0
    %80 = vmatpush.msra.mxu0 0.0
    %81 = vmatpush.msra.mxu0 0.0
    %82 = vmatpush.msra.mxu0 0.0
    %83 = vmatpush.msra.mxu0 0.0
    %84 = vmatpush.msra.mxu0 0.0
    %85 = vmatpush.msra.mxu0 0.0
    %86 = vmatpush.msra.mxu0 0.0
    %87 = vmatpush.msra.mxu0 0.0
    %88 = vmatpush.msra.mxu0 0.0
    %89 = vmatpush.msra.mxu0 0.0
    %90 = vmatpush.msra.mxu0 0.0
    %91 = vmatpush.msra.mxu0 0.0
    %92 = vmatpush.msra.mxu0 %v52
    %93 = vmatmul.f32.gmra.mxu0 %v55
    %v94 = vpop.f32.mrf.mxu0
    %v95 = vadd.f32 0.0, %v94
    %96 = vdwg.mxu0
    %v97 = vadd.f32 %v75, %v95
    %98 = vadd.xlane.f32.xlu0 %v97
    %v99 = vpop.xlane.xlu0 %98
    %v100 = vadd.f32 %v99, 0.0
    %v101 = vmul.f32 %v75, %v75
    %v102 = vmul.f32 %v95, %v95
    %v103 = vadd.f32 %v101, %v102
    %104 = vadd.xlane.f32.xlu0 %v103
    %v105 = vpop.xlane.xlu0 %104
    %v106 = vadd.f32 %v105, 0.0
    %s107 = scalar_lea.vmem [#allocation2], 16
    %v108 = vld [vmem:[%s107] sm:$0xff]
    %v109 = vld [vmem:[%s107 + $0x8] sm:$0xff]
    %110 = vmatpush.msra.mxu0 0.0
    %111 = vmatpush.msra.mxu0 0.0
    %112 = vmatpush.msra.mxu0 0.0
    %113 = vmatpush.msra.mxu0 0.0
    %114 = vmatpush.msra.mxu0 0.0
    %115 = vmatpush.msra.mxu0 0.0
    %116 = vmatpush.msra.mxu0 0.0
    %117 = vmatpush.msra.mxu0 0.0
    %118 = vmatpush.msra.mxu0 0.0
    %119 = vmatpush.msra.mxu0 0.0
    %120 = vmatpush.msra.mxu0 0.0
    %121 = vmatpush.msra.mxu0 0.0
    %122 = vmatpush.msra.mxu0 0.0
    %123 = vmatpush.msra.mxu0 0.0
    %124 = vmatpush.msra.mxu0 0.0
    %125 = vmatpush.msra.mxu0 %v108
    %126 = vmatmul.f32.gmra.mxu0 %v55
    %v127 = vpop.f32.mrf.mxu0
    %v128 = vadd.f32 0.0, %v127
    %129 = vdwg.mxu0
    %130 = vmatpush.msra.mxu0 0.0
    %131 = vmatpush.msra.mxu0 0.0
    %132 = vmatpush.msra.mxu0 0.0
    %133 = vmatpush.msra.mxu0 0.0
    %134 = vmatpush.msra.mxu0 0.0
    %135 = vmatpush.msra.mxu0 0.0
    %136 = vmatpush.msra.mxu0 0.0
    %137 = vmatpush.msra.mxu0 0.0
    %138 = vmatpush.msra.mxu0 0.0
    %139 = vmatpush.msra.mxu0 0.0
    %140 = vmatpush.msra.mxu0 0.0
    %141 = vmatpush.msra.mxu0 0.0
    %142 = vmatpush.msra.mxu0 0.0
    %143 = vmatpush.msra.mxu0 0.0
    %144 = vmatpush.msra.mxu0 0.0
    %145 = vmatpush.msra.mxu0 %v109
    %146 = vmatmul.f32.gmra.mxu0 %v55
    %v147 = vpop.f32.mrf.mxu0
    %v148 = vadd.f32 0.0, %v147
    %149 = vdwg.mxu0
    %v150 = vadd.f32 %v128, %v148
    %151 = vadd.xlane.f32.xlu0 %v150
    %v152 = vpop.xlane.xlu0 %151
    %v153 = vadd.f32 %v100, %v152
    %v154 = vmul.f32 %v128, %v128
    %v155 = vmul.f32 %v148, %v148
    %v156 = vadd.f32 %v154, %v155
    %157 = vadd.xlane.f32.xlu0 %v156
    %v158 = vpop.xlane.xlu0 %157
    %v159 = vadd.f32 %v106, %v158
    %v160 = vmul.f32 %v153, 0.001953125
    %v161 = vmul.f32 %v159, 0.001953125
    %v162 = vmul.f32 %v160, %v160
    %v163 = vsub.f32 %v161, %v162
    %v164 = vmax.f32 %v163, 0.0
    %v165 = vadd.f32 %v164, 1e-05
    %v166 = vrsqrt.pop %v165
    %v167 = vmul.f32 %v166, %v165
    %v168 = vmul.f32 %v167, %v166
    %v169 = vmul.f32 0.5, %v168
    %v170 = vsub.f32 1.5, %v169
    %v171 = vmul.f32 %v166, %v170
    %vm172 = vweird.f32 %v165
    %vm173 = vweird.f32 %v166
    %vm174 = vmor %vm172, %vm173
    %v175 = vsel %vm174, %v166, %v171
    %v176 = vmul.f32 %v50, %v175
    %v177 = vmul.f32 %v160, %v176
    %179 = vrot.lane.b32.xlu0 %v177, 1
    %v180 = vpop.permute.xlu0 %179
    %v182 = vsub.f32 %v50, %v180
    %184 = vset.pattern.permute.xlu0 0
    %185 = vperm.xlu0 %184, %v176
    %v186 = vpop.permute.xlu0 %185
    %v188 = vmul.f32 %v75, %v186
    %v189 = vmul.f32 %v95, %v186
    %191 = vset.pattern.permute.xlu0 1
    %192 = vperm.xlu0 %191, %v182
    %v193 = vpop.permute.xlu0 %192
    %v195 = vadd.f32 %v188, %v193
    %v196 = vadd.f32 %v189, %v193
    %v197 = vmax.f32 %v195, 0.0
    %v198 = vmax.f32 %v196, 0.0
    %v200 = vsel %vm53, %v49, 0
    %202 = vmatpush.msra.mxu0 0.0
    %203 = vmatpush.msra.mxu0 0.0
    %204 = vmatpush.msra.mxu0 0.0
    %205 = vmatpush.msra.mxu0 0.0
    %206 = vmatpush.msra.mxu0 0.0
    %207 = vmatpush.msra.mxu0 0.0
    %208 = vmatpush.msra.mxu0 0.0
    %209 = vmatpush.msra.mxu0 0.0
    %210 = vmatpush.msra.mxu0 0.0
    %211 = vmatpush.msra.mxu0 0.0
    %212 = vmatpush.msra.mxu0 0.0
    %213 = vmatpush.msra.mxu0 0.0
    %214 = vmatpush.msra.mxu0 0.0
    %215 = vmatpush.msra.mxu0 0.0
    %216 = vmatpush.msra.mxu0 0.0
    %217 = vmatpush.msra.mxu0 %v197
    %218 = vmatmul.f32.gmra.mxu0 %v200
    %v219 = vpop.f32.mrf.mxu0
    %v220 = vadd.f32 0.0, %v219
    %221 = vdwg.mxu0
    %222 = vmatpush.msra.mxu0 0.0
    %223 = vmatpush.msra.mxu0 0.0
    %224 = vmatpush.msra.mxu0 0.0
    %225 = vmatpush.msra.mxu0 0.0
    %226 = vmatpush.msra.mxu0 0.0
    %227 = vmatpush.msra.mxu0 0.0
    %228 = vmatpush.msra.mxu0 0.0
    %229 = vmatpush.msra.mxu0 0.0
    %230 = vmatpush.msra.mxu0 0.0
    %231 = vmatpush.msra.mxu0 0.0
    %232 = vmatpush.msra.mxu0 0.0
    %233 = vmatpush.msra.mxu0 0.0
    %234 = vmatpush.msra.mxu0 0.0
    %235 = vmatpush.msra.mxu0 0.0
    %236 = vmatpush.msra.mxu0 0.0
    %237 = vmatpush.msra.mxu0 %v198
    %238 = vmatmul.f32.gmra.mxu0 %v200
    %v239 = vpop.f32.mrf.mxu0
    %v240 = vadd.f32 0.0, %v239
    %241 = vdwg.mxu0
    %v242 = vadd.f32 %v220, %v240
    %243 = vadd.xlane.f32.xlu0 %v242
    %v244 = vpop.xlane.xlu0 %243
    %v245 = vadd.f32 %v244, 0.0
    %v246 = vmul.f32 %v220, %v220
    %v247 = vmul.f32 %v240, %v240
    %v248 = vadd.f32 %v246, %v247
    %249 = vadd.xlane.f32.xlu0 %v248
    %v250 = vpop.xlane.xlu0 %249
    %v251 = vadd.f32 %v250, 0.0
    %v252 = vmul.f32 %v128, %v186
    %v253 = vmul.f32 %v148, %v186
    %v254 = vadd.f32 %v252, %v193
    %v255 = vadd.f32 %v253, %v193
    %v256 = vmax.f32 %v254, 0.0
    %v257 = vmax.f32 %v255, 0.0
    %258 = vmatpush.msra.mxu0 0.0
    %259 = vmatpush.msra.mxu0 0.0
    %260 = vmatpush.msra.mxu0 0.0
    %261 = vmatpush.msra.mxu0 0.0
    %262 = vmatpush.msra.mxu0 0.0
    %263 = vmatpush.msra.mxu0 0.0
    %264 = vmatpush.msra.mxu0 0.0
    %265 = vmatpush.msra.mxu0 0.0
    %266 = vmatpush.msra.mxu0 0.0
    %267 = vmatpush.msra.mxu0 0.0
    %268 = vmatpush.msra.mxu0 0.0
    %269 = vmatpush.msra.mxu0 0.0
    %270 = vmatpush.msra.mxu0 0.0
    %271 = vmatpush.msra.mxu0 0.0
    %272 = vmatpush.msra.mxu0 0.0
    %273 = vmatpush.msra.mxu0 %v256
    %274 = vmatmul.f32.gmra.mxu0 %v200
    %v275 = vpop.f32.mrf.mxu0
    %v276 = vadd.f32 0.0, %v275
    %277 = vdwg.mxu0
    %278 = vmatpush.msra.mxu0 0.0
    %279 = vmatpush.msra.mxu0 0.0
    %280 = vmatpush.msra.mxu0 0.0
    %281 = vmatpush.msra.mxu0 0.0
    %282 = vmatpush.msra.mxu0 0.0
    %283 = vmatpush.msra.mxu0 0.0
    %284 = vmatpush.msra.mxu0 0.0
    %285 = vmatpush.msra.mxu0 0.0
    %286 = vmatpush.msra.mxu0 0.0
    %287 = vmatpush.msra.mxu0 0.0
    %288 = vmatpush.msra.mxu0 0.0
    %289 = vmatpush.msra.mxu0 0.0
    %290 = vmatpush.msra.mxu0 0.0
    %291 = vmatpush.msra.mxu0 0.0
    %292 = vmatpush.msra.mxu0 0.0
    %293 = vmatpush.msra.mxu0 %v257
    %294 = vmatmul.f32.gmra.mxu0 %v200
    %v295 = vpop.f32.mrf.mxu0
    %v296 = vadd.f32 0.0, %v295
    %297 = vdwg.mxu0
    %v298 = vadd.f32 %v276, %v296
    %299 = vadd.xlane.f32.xlu0 %v298
    %v300 = vpop.xlane.xlu0 %299
    %v301 = vadd.f32 %v245, %v300
    %v302 = vmul.f32 %v276, %v276
    %v303 = vmul.f32 %v296, %v296
    %v304 = vadd.f32 %v302, %v303
    %305 = vadd.xlane.f32.xlu0 %v304
    %v306 = vpop.xlane.xlu0 %305
    %v307 = vadd.f32 %v251, %v306
    %v308 = vmul.f32 %v301, 0.001953125
    %v309 = vmul.f32 %v307, 0.001953125
    %v310 = vmul.f32 %v308, %v308
    %v311 = vsub.f32 %v309, %v310
    %v312 = vmax.f32 %v311, 0.0
    %v313 = vadd.f32 %v312, 1e-05
    %v314 = vrsqrt.pop %v313
    %v315 = vmul.f32 %v314, %v313
    %v316 = vmul.f32 %v315, %v314
    %v317 = vmul.f32 0.5, %v316
    %v318 = vsub.f32 1.5, %v317
    %v319 = vmul.f32 %v314, %v318
    %vm320 = vweird.f32 %v313
    %vm321 = vweird.f32 %v314
    %vm322 = vmor %vm320, %vm321
    %v323 = vsel %vm322, %v314, %v319
    %v324 = vmul.f32 %v50, %v323
    %v325 = vmul.f32 %v308, %v324
    %327 = vrot.lane.b32.xlu0 %v325, 1
    %v328 = vpop.permute.xlu0 %327
    %v330 = vsub.f32 %v50, %v328
    %332 = vset.pattern.permute.xlu0 2
    %333 = vperm.xlu0 %332, %v324
    %v334 = vpop.permute.xlu0 %333
    %v336 = vmul.f32 %v220, %v334
    %v337 = vmul.f32 %v240, %v334
    %339 = vset.pattern.permute.xlu0 3
    %340 = vperm.xlu0 %339, %v330
    %v341 = vpop.permute.xlu0 %340
    %v343 = vadd.f32 %v336, %v341
    %v344 = vadd.f32 %v337, %v341
    %v345 = vadd.f32 %v343, %v51
    %v346 = vadd.f32 %v344, %v52
    %v347 = vmax.f32 %v345, 0.0
    %v348 = vmax.f32 %v346, 0.0
    %349 = vst [vmem:[#allocation7] sm:$0xff] %v347
    %350 = vst [vmem:[#allocation7 + $0x8] sm:$0xff] %v348
    %v351 = vld [vmem:[%s107] sm:$0xff]
    %v352 = vld [vmem:[%s107 + $0x8] sm:$0xff]
    %353 = vmatpush.msra.mxu0 0.0
    %354 = vmatpush.msra.mxu0 0.0
    %355 = vmatpush.msra.mxu0 0.0
    %356 = vmatpush.msra.mxu0 0.0
    %357 = vmatpush.msra.mxu0 0.0
    %358 = vmatpush.msra.mxu0 0.0
    %359 = vmatpush.msra.mxu0 0.0
    %360 = vmatpush.msra.mxu0 0.0
    %361 = vmatpush.msra.mxu0 0.0
    %362 = vmatpush.msra.mxu0 0.0
    %363 = vmatpush.msra.mxu0 0.0
    %364 = vmatpush.msra.mxu0 0.0
    %365 = vmatpush.msra.mxu0 0.0
    %366 = vmatpush.msra.mxu0 0.0
    %367 = vmatpush.msra.mxu0 0.0
    %368 = vmatpush.msra.mxu0 %v351
    %369 = vmatmul.f32.gmra.mxu0 %v55
    %v370 = vpop.f32.mrf.mxu0
    %v371 = vadd.f32 0.0, %v370
    %372 = vdwg.mxu0
    %373 = vmatpush.msra.mxu0 0.0
    %374 = vmatpush.msra.mxu0 0.0
    %375 = vmatpush.msra.mxu0 0.0
    %376 = vmatpush.msra.mxu0 0.0
    %377 = vmatpush.msra.mxu0 0.0
    %378 = vmatpush.msra.mxu0 0.0
    %379 = vmatpush.msra.mxu0 0.0
    %380 = vmatpush.msra.mxu0 0.0
    %381 = vmatpush.msra.mxu0 0.0
    %382 = vmatpush.msra.mxu0 0.0
    %383 = vmatpush.msra.mxu0 0.0
    %384 = vmatpush.msra.mxu0 0.0
    %385 = vmatpush.msra.mxu0 0.0
    %386 = vmatpush.msra.mxu0 0.0
    %387 = vmatpush.msra.mxu0 0.0
    %388 = vmatpush.msra.mxu0 %v352
    %389 = vmatmul.f32.gmra.mxu0 %v55
    %v390 = vpop.f32.mrf.mxu0
    %v391 = vadd.f32 0.0, %v390
    %392 = vdwg.mxu0
    %v393 = vmul.f32 %v371, %v186
    %v394 = vmul.f32 %v391, %v186
    %v395 = vadd.f32 %v393, %v193
    %v396 = vadd.f32 %v394, %v193
    %v397 = vmax.f32 %v395, 0.0
    %v398 = vmax.f32 %v396, 0.0
    %399 = vmatpush.msra.mxu0 0.0
    %400 = vmatpush.msra.mxu0 0.0
    %401 = vmatpush.msra.mxu0 0.0
    %402 = vmatpush.msra.mxu0 0.0
    %403 = vmatpush.msra.mxu0 0.0
    %404 = vmatpush.msra.mxu0 0.0
    %405 = vmatpush.msra.mxu0 0.0
    %406 = vmatpush.msra.mxu0 0.0
    %407 = vmatpush.msra.mxu0 0.0
    %408 = vmatpush.msra.mxu0 0.0
    %409 = vmatpush.msra.mxu0 0.0
    %410 = vmatpush.msra.mxu0 0.0
    %411 = vmatpush.msra.mxu0 0.0
    %412 = vmatpush.msra.mxu0 0.0
    %413 = vmatpush.msra.mxu0 0.0
    %414 = vmatpush.msra.mxu0 %v397
    %415 = vmatmul.f32.gmra.mxu0 %v200
    %v416 = vpop.f32.mrf.mxu0
    %v417 = vadd.f32 0.0, %v416
    %418 = vdwg.mxu0
    %419 = vmatpush.msra.mxu0 0.0
    %420 = vmatpush.msra.mxu0 0.0
    %421 = vmatpush.msra.mxu0 0.0
    %422 = vmatpush.msra.mxu0 0.0
    %423 = vmatpush.msra.mxu0 0.0
    %424 = vmatpush.msra.mxu0 0.0
    %425 = vmatpush.msra.mxu0 0.0
    %426 = vmatpush.msra.mxu0 0.0
    %427 = vmatpush.msra.mxu0 0.0
    %428 = vmatpush.msra.mxu0 0.0
    %429 = vmatpush.msra.mxu0 0.0
    %430 = vmatpush.msra.mxu0 0.0
    %431 = vmatpush.msra.mxu0 0.0
    %432 = vmatpush.msra.mxu0 0.0
    %433 = vmatpush.msra.mxu0 0.0
    %434 = vmatpush.msra.mxu0 %v398
    %435 = vmatmul.f32.gmra.mxu0 %v200
    %v436 = vpop.f32.mrf.mxu0
    %v437 = vadd.f32 0.0, %v436
    %438 = vdwg.mxu0
    %v439 = vmul.f32 %v417, %v334
    %v440 = vmul.f32 %v437, %v334
    %v441 = vadd.f32 %v439, %v341
    %v442 = vadd.f32 %v440, %v341
    %v443 = vadd.f32 %v441, %v351
    %v444 = vadd.f32 %v442, %v352
    %v445 = vmax.f32 %v443, 0.0
    %v446 = vmax.f32 %v444, 0.0
    %s447 = scalar_lea.vmem [#allocation7], 16
    %448 = vst [vmem:[%s447] sm:$0xff] %v445
    %449 = vst [vmem:[%s447 + $0x8] sm:$0xff] %v446
    // Predicated region
    $region26: #{tpu_custom_call.1} parent=1 // pred_check
      _
    $region27: #{tpu_custom_call.1} parent=1 // pred_check_branch
      %451 = sbr.rel (0) target = $region29
    $region28: #{tpu_custom_call.1} parent=1 // pred_region
      %453 = vsyncadd [#allocation4], 0
      %s454 = sshll.u32 [#allocation7], 4
      %s455 = int_to_ptr.vmem [resolvable:$true] %s454
      %s456 = sshll.u32 %s4, 4
      %s457 = int_to_ptr.hbm [resolvable:$true] %s456
      %462 = dma.vmem_to_hbm [thread:$0]  %s455, 512, %s457, [#allocation4], 256, 256, 16
    $region29: #{tpu_custom_call.1} parent=1 // pred_fallthru
      _
    // Predicated region
    $region30: #{tpu_custom_call.1} parent=1 // pred_check
      _
    $region31: #{tpu_custom_call.1} parent=1 // pred_check_branch
      %464 = sbr.rel (0) target = $region33
    $region32: #{tpu_custom_call.1} parent=1 // pred_region
      %466 = dma.done [#allocation4], 512
    $region33: #{tpu_custom_call.1} parent=1 // pred_fallthru
      _
    %467 = vsyncpa [#allocation3], 1
    %468 = vsyncpa [#allocation6], 1
    %469 = vsyncpa [#allocation4], 1

</llo_original>
